<compile_context>
chip_gen: v6e
topology: v6e:2x2x1
jax: 0.10.0
libtpu: 0.0.40
codegen_flags: <defaults>
</compile_context>

<pallas_src>
import numpy as np
import jax
import jax.numpy as jnp
from jax.experimental import pallas as pl
from jax.experimental.pallas import tpu as pltpu

NUM_BASELINES = 3
MEAN = True
SCALE = float(NUM_BASELINES) if MEAN else 1.0
INV_SCALE = 1.0 / SCALE

NEG_FILL = -1.0e30          # finite "-inf" for padding / accumulator init
_MIB = 1024 * 1024


def _round_up(x, m):
    return ((x + m - 1) // m) * m


def _vmem_budget_bytes():
    """Generation-aware scoped-VMEM budget: half of physical, capped at 96 MiB."""
    try:
        cap = int(pltpu.get_tpu_info().vmem_capacity_bytes)
    except Exception:
        cap = 128 * _MIB
    return int(min(96 * _MIB, cap // 2))


def additive_baseline(neg_logits, z_x, w, bias, const, *,
                      lanes=512, tile_rows=None, num_cores=2):
    """Fused AdditiveBaseline forward.

    neg_logits: (B, N) float (f32 or bf16; streamed at its own width)
    z_x:        (B, D) float
    w:          (D, 1) float   Linear(D, 1) weight (transposed layout)
    bias/const: (1, 1) float   Linear bias / ConstantBaseline parameter
    returns:    (B, 1) float32
    """
    Bn, N = neg_logits.shape
    B, D = z_x.shape
    assert Bn == B, "neg_logits and z_x must share the batch dimension"
    assert w.shape == (D, 1)
    assert lanes % 128 == 0

    budget = _vmem_budget_bytes()
    itemsize = jnp.dtype(neg_logits.dtype).itemsize

    # ---- wrapper-side layout plumbing (not compute) --------------------------
    total = Bn * N
    log_inv_count = float(-np.log(total))          # -log(neg_logits.size)

    rows = pl.cdiv(total, lanes)
    if tile_rows is None:
        # 2x double-buffered input tiles + 2x f32 accumulators per core must
        # stay well under the scoped budget; cap tile at a few MiB (v7x-safe).
        tgt = min(8 * _MIB, budget // 16)
        tile_rows = max(8, (tgt // (lanes * itemsize)) // 8 * 8)
    tile_rows = int(min(tile_rows, _round_up(rows, 8)))
    tile_rows = max(8, (tile_rows // 8) * 8)

    rows_pad = _round_up(rows, num_cores * tile_rows)
    padded_total = rows_pad * lanes

    flat = neg_logits.reshape(-1)
    flat = jnp.pad(flat, (0, padded_total - total), constant_values=NEG_FILL)
    slab = flat.reshape(rows_pad, lanes)            # contiguous streamed slab

    steps_per_core = (rows_pad // tile_rows) // num_cores
    S = steps_per_core

    zx_t = z_x.T.astype(jnp.float32)                # (D, B): B on the lane axis
    w_f32 = w.astype(jnp.float32)                   # (D, 1)
    cb = (bias + const).reshape(1).astype(jnp.float32)   # (c + b) scalar -> SMEM

    # ---- kernel 1: streamed, megacore-split partial logsumexp ---------------
    def stream_kernel(neg_ref, plse_ref, m_ref, s_ref):
        k = pl.program_id(1)

        @pl.when(k == 0)
        def _():
            m_ref[...] = jnp.full(m_ref.shape, NEG_FILL, dtype=m_ref.dtype)
            s_ref[...] = jnp.zeros(s_ref.shape, dtype=s_ref.dtype)

        # Pure VPU/EUP elementwise online-LSE update (no per-tile XLU reduce).
        x = neg_ref[...].astype(jnp.float32)        # (tile_rows, lanes)
        m_prev = m_ref[...]
        m_new = jnp.maximum(m_prev, x)
        s_ref[...] = s_ref[...] * jnp.exp(m_prev - m_new) + jnp.exp(x - m_new)
        m_ref[...] = m_new

        @pl.when(k == pl.num_programs(1) - 1)
        def _():
            # Single cross-lane/sublane reduction per core (once per kernel).
            m_all = jnp.max(m_ref[...], keepdims=True)                     # (1,1)
            total_s = jnp.sum(s_ref[...] * jnp.exp(m_ref[...] - m_all),
                              keepdims=True)                               # (1,1)
            lse = m_all + jnp.log(total_s)                                 # (1,1)
            plse_ref[...] = jnp.broadcast_to(lse.reshape(1, 1, 1),
                                             plse_ref.shape)

    stream_cost = pl.CostEstimate(
        flops=int(5 * padded_total),
        transcendentals=int(2 * padded_total),
        bytes_accessed=int(padded_total * itemsize + num_cores * 8 * 128 * 4),
    )

    partial_lse = pl.pallas_call(
        stream_kernel,
        out_shape=jax.ShapeDtypeStruct((num_cores, 8, 128), jnp.float32),
        grid_spec=pltpu.PrefetchScalarGridSpec(
            num_scalar_prefetch=0,
            grid=(num_cores, steps_per_core),
            in_specs=[
                # Large contiguous row-block tiles; leading axis shards across
                # TensorCores, inner axis is the streamed reduction.
                # TODO(synk): sweep pipeline_mode=pl.Buffered(3) if DMA is exposed.
                pl.BlockSpec((tile_rows, lanes), lambda c, k: (c * S + k, 0)),
            ],
            out_specs=pl.BlockSpec((1, 8, 128), lambda c, k: (c, 0, 0)),
            scratch_shapes=[pltpu.VMEM((tile_rows, lanes), jnp.float32),   # running max
                            pltpu.VMEM((tile_rows, lanes), jnp.float32)],  # running sum
        ),
        compiler_params=pltpu.CompilerParams(
            dimension_semantics=("parallel", "arbitrary"),
            vmem_limit_bytes=budget,
        ),
        cost_estimate=stream_cost,
    )(slab)

    # ---- kernel 2: epilogue (combine partials + Linear(D->1) + bias + scale) -
    def epilogue_kernel(plse_ref, zxT_ref, w_ref, cb_ref, out_ref):
        p = plse_ref[...]                           # (num_cores, 8, 128)
        lse = p[0, 0:1, 0:1]                        # (1, 1) partial LSE, core 0
        for c in range(1, num_cores):               # static, tiny logaddexp chain
            o = p[c, 0:1, 0:1]
            m = jnp.maximum(lse, o)
            lse = m + jnp.log(jnp.exp(lse - m) + jnp.exp(o - m))
        lse = lse + log_inv_count                   # logsumexp -> logmeanexp

        # LearnedConditionalBaseline: Linear(D->1) as VPU mul + sublane reduce,
        # emitted lane-dense as (1, B).
        learned = jnp.sum(zxT_ref[...] * w_ref[...], axis=0, keepdims=True)
        cb_scalar = cb_ref[0]                       # SMEM scalar (c + b)
        out_ref[...] = (cb_scalar + lse + learned) * INV_SCALE

    out_1b = pl.pallas_call(
        epilogue_kernel,
        out_shape=jax.ShapeDtypeStruct((1, B), jnp.float32),
        grid_spec=pltpu.PrefetchScalarGridSpec(
            num_scalar_prefetch=0,
            grid=(1,),
            in_specs=[
                pl.BlockSpec((num_cores, 8, 128), lambda i: (0, 0, 0)),
                pl.BlockSpec((D, B), lambda i: (0, 0)),
                pl.BlockSpec((D, 1), lambda i: (0, 0)),
                pl.BlockSpec(memory_space=pltpu.MemorySpace.SMEM),
            ],
            out_specs=pl.BlockSpec((1, B), lambda i: (0, 0)),
        ),
        compiler_params=pltpu.CompilerParams(
            dimension_semantics=("arbitrary",),
        ),
    )(partial_lse, zx_t, w_f32, cb)

    return out_1b.reshape(B, 1)


def reference(neg_logits, z_x, w, bias, const):
    lme = jax.scipy.special.logsumexp(neg_logits) - jnp.log(
        jnp.float32(neg_logits.size))
    learned = z_x @ w + bias[0, 0]
    return (const[0, 0] + lme + learned) / SCALE


if __name__ == "__main__":
    B, N, D = 8, 2000, 32   # batch, num negatives, embedding dim (small demo)

    key = jax.random.PRNGKey(0)
    k_neg, k_zx, k_w = jax.random.split(key, 3)

    neg_logits = jax.random.normal(k_neg, (B, N), dtype=jnp.float32)
    z_x = jax.random.normal(k_zx, (B, D), dtype=jnp.float32)

    # Deterministic parameter init (synthetic; shapes per module __init__).
    w = (jax.random.normal(k_w, (D, 1), dtype=jnp.float32)
         / jnp.sqrt(jnp.float32(D)))                    # Linear(D, 1) weight
    bias = jnp.full((1, 1), 0.1, dtype=jnp.float32)     # Linear bias
    const = jnp.full((1, 1), 0.5, dtype=jnp.float32)    # ConstantBaseline param

    # Small lanes / tile_rows so the demo exercises the megacore axis (2),
    # several streamed tiles per core (grid = (2, 4)) AND the -inf-style
    # padding of the last tile (16000 elements -> 16384 padded).
    out = additive_baseline(neg_logits, z_x, w, bias, const,
                            lanes=128, tile_rows=16)
    jax.block_until_ready(out)

    ref = reference(neg_logits, z_x, w, bias, const)
    assert out.shape == (B, 1)
    assert jnp.allclose(out, ref, atol=1e-4, rtol=1e-4), (out, ref)

    print("KERNEL_OK")
</pallas_src>

<mosaic_0001>
module attributes {stable_mosaic.version = 11 : i64} {
  func.func @stream_kernel(%arg0: i32, %arg1: i32, %arg2: memref<16x128xf32, #tpu.memory_space<vmem>>, %arg3: memref<1x8x128xf32, #tpu.memory_space<vmem>>, %arg4: memref<16x128xf32, #tpu.memory_space<vmem>>, %arg5: memref<16x128xf32, #tpu.memory_space<vmem>>) attributes {dimension_semantics = [#tpu.dimension_semantics<parallel>, #tpu.dimension_semantics<arbitrary>], iteration_bounds = array<i64: 2, 4>, scalar_prefetch = 0 : i64, scratch_operands = 2 : i64, tpu.core_type = #tpu.core_type<tc>, window_params = [{transform_indices = @transform_0, window_bounds = array<i64: 16, 128>}, {transform_indices = @transform_1, window_bounds = array<i64: 1, 8, 128>}]} {
    %c0_i32 = arith.constant 0 : i32
    %0 = arith.cmpi eq, %arg1, %c0_i32 : i32
    %1 = arith.extui %0 : i1 to i32
    %c0_i32_0 = arith.constant 0 : i32
    %2 = arith.cmpi ne, %1, %c0_i32_0 : i32
    scf.if %2 {
      %cst = arith.constant -1.000000e+30 : f32
      %18 = vector.broadcast %cst : f32 to vector<16x128xf32>
      %c0_11 = arith.constant 0 : index
      %c0_12 = arith.constant 0 : index
      %19 = vector.load %arg4[%c0_11, %c0_12] : memref<16x128xf32, #tpu.memory_space<vmem>>, vector<16x128xf32>
      tpu.vector_store %arg4[%c0_11, %c0_12], %18 {strides = array<i32>} : memref<16x128xf32, #tpu.memory_space<vmem>>, vector<16x128xf32>,
      %cst_13 = arith.constant 0.000000e+00 : f32
      %20 = vector.broadcast %cst_13 : f32 to vector<16x128xf32>
      %c0_14 = arith.constant 0 : index
      %c0_15 = arith.constant 0 : index
      %21 = vector.load %arg5[%c0_14, %c0_15] : memref<16x128xf32, #tpu.memory_space<vmem>>, vector<16x128xf32>
      tpu.vector_store %arg5[%c0_14, %c0_15], %20 {strides = array<i32>} : memref<16x128xf32, #tpu.memory_space<vmem>>, vector<16x128xf32>,
    } else {
    }
    %c0 = arith.constant 0 : index
    %c0_1 = arith.constant 0 : index
    %3 = vector.load %arg2[%c0, %c0_1] : memref<16x128xf32, #tpu.memory_space<vmem>>, vector<16x128xf32>
    %c0_2 = arith.constant 0 : index
    %c0_3 = arith.constant 0 : index
    %4 = vector.load %arg4[%c0_2, %c0_3] : memref<16x128xf32, #tpu.memory_space<vmem>>, vector<16x128xf32>
    %5 = arith.maximumf %4, %3 : vector<16x128xf32>
    %c0_4 = arith.constant 0 : index
    %c0_5 = arith.constant 0 : index
    %6 = vector.load %arg5[%c0_4, %c0_5] : memref<16x128xf32, #tpu.memory_space<vmem>>, vector<16x128xf32>
    %7 = arith.subf %4, %5 : vector<16x128xf32>
    %8 = math.exp %7 : vector<16x128xf32>
    %9 = arith.mulf %6, %8 : vector<16x128xf32>
    %10 = arith.subf %3, %5 : vector<16x128xf32>
    %11 = math.exp %10 : vector<16x128xf32>
    %12 = arith.addf %9, %11 : vector<16x128xf32>
    %c0_6 = arith.constant 0 : index
    %c0_7 = arith.constant 0 : index
    %13 = vector.load %arg5[%c0_6, %c0_7] : memref<16x128xf32, #tpu.memory_space<vmem>>, vector<16x128xf32>
    tpu.vector_store %arg5[%c0_6, %c0_7], %12 {strides = array<i32>} : memref<16x128xf32, #tpu.memory_space<vmem>>, vector<16x128xf32>,
    %c0_8 = arith.constant 0 : index
    %c0_9 = arith.constant 0 : index
    %14 = vector.load %arg4[%c0_8, %c0_9] : memref<16x128xf32, #tpu.memory_space<vmem>>, vector<16x128xf32>
    tpu.vector_store %arg4[%c0_8, %c0_9], %5 {strides = array<i32>} : memref<16x128xf32, #tpu.memory_space<vmem>>, vector<16x128xf32>,
    %c3_i32 = arith.constant 3 : i32
    %15 = arith.cmpi eq, %arg1, %c3_i32 : i32
    %16 = arith.extui %15 : i1 to i32
    %c0_i32_10 = arith.constant 0 : i32
    %17 = arith.cmpi ne, %16, %c0_i32_10 : i32
    scf.if %17 {
      %c0_11 = arith.constant 0 : index
      %c0_12 = arith.constant 0 : index
      %18 = vector.load %arg4[%c0_11, %c0_12] : memref<16x128xf32, #tpu.memory_space<vmem>>, vector<16x128xf32>
      %19 = vector.shape_cast %18 : vector<16x128xf32> to vector<1x16x128xf32>
      %cst = arith.constant dense<0xFF800000> : vector<1xf32>
      %20 = vector.multi_reduction <maximumf>, %19, %cst [1, 2] : vector<1x16x128xf32> to vector<1xf32>
      %21 = vector.shape_cast %20 : vector<1xf32> to vector<1x1x1xf32>
      %22 = vector.extract %21[0, 0, 0] : f32 from vector<1x1x1xf32>
      %23 = vector.broadcast %22 : f32 to vector<1x1xf32>
      %c0_13 = arith.constant 0 : index
      %c0_14 = arith.constant 0 : index
      %24 = vector.load %arg5[%c0_13, %c0_14] : memref<16x128xf32, #tpu.memory_space<vmem>>, vector<16x128xf32>
      %c0_15 = arith.constant 0 : index
      %c0_16 = arith.constant 0 : index
      %25 = vector.load %arg4[%c0_15, %c0_16] : memref<16x128xf32, #tpu.memory_space<vmem>>, vector<16x128xf32>
      %26 = vector.broadcast %23 : vector<1x1xf32> to vector<16x128xf32>
      %27 = arith.subf %25, %26 : vector<16x128xf32>
      %28 = math.exp %27 : vector<16x128xf32>
      %29 = arith.mulf %24, %28 : vector<16x128xf32>
      %30 = vector.shape_cast %29 : vector<16x128xf32> to vector<1x16x128xf32>
      %cst_17 = arith.constant dense<0.000000e+00> : vector<1xf32>
      %31 = vector.multi_reduction <add>, %30, %cst_17 [1, 2] : vector<1x16x128xf32> to vector<1xf32>
      %32 = vector.shape_cast %31 : vector<1xf32> to vector<1x1x1xf32>
      %33 = vector.extract %32[0, 0, 0] : f32 from vector<1x1x1xf32>
      %34 = vector.broadcast %33 : f32 to vector<1x1xf32>
      %35 = math.log %34 : vector<1x1xf32>
      %36 = arith.addf %23, %35 : vector<1x1xf32>
      %37 = vector.shape_cast %36 : vector<1x1xf32> to vector<1x1x1xf32>
      %38 = vector.shape_cast %37 : vector<1x1x1xf32> to vector<1x1x1xf32>
      %39 = vector.broadcast %38 : vector<1x1x1xf32> to vector<1x8x128xf32>
      %c0_18 = arith.constant 0 : index
      %c0_19 = arith.constant 0 : index
      %c0_20 = arith.constant 0 : index
      %40 = vector.load %arg3[%c0_18, %c0_19, %c0_20] : memref<1x8x128xf32, #tpu.memory_space<vmem>>, vector<1x8x128xf32>
      tpu.vector_store %arg3[%c0_18, %c0_19, %c0_20], %39 {strides = array<i32>} : memref<1x8x128xf32, #tpu.memory_space<vmem>>, vector<1x8x128xf32>,
    } else {
    }
    return
  }
  func.func @transform_0(%arg0: i32, %arg1: i32) -> (i32, i32) {
    %c4_i32 = arith.constant 4 : i32
    %0 = arith.muli %arg0, %c4_i32 : i32
    %1 = arith.addi %0, %arg1 : i32
    %c0_i32 = arith.constant 0 : i32
    %c0_i32_0 = arith.constant 0 : i32
    return %1, %c0_i32 : i32, i32
  }
  func.func @transform_1(%arg0: i32, %arg1: i32) -> (i32, i32, i32) {
    %c0_i32 = arith.constant 0 : i32
    %c0_i32_0 = arith.constant 0 : i32
    %c0_i32_1 = arith.constant 0 : i32
    return %arg0, %c0_i32, %c0_i32_0 : i32, i32, i32
  }
}

</mosaic_0001>

<llo_original>
// kernel: tpu_custom_call.1
$region0: #{tpu_custom_call.1}
  #allocation0 [shape = 'u32[]', space=smem, size = 0x4, offset = 0x4, fixed_abs, tag = 'smem constant byte address 0x4 - core index']
  #allocation1 [shape = 'u32[144,128]{1,0:T(1,128)}', space=vmem, size = 0x12000, scoped, tag = 'internal scratch']
  #allocation2 [shape = 'f32[16,128]{1,0:T(8,128)}', space=vmem, size = 0x2000, scoped, tag = 'scratch operand']
  #allocation3 [shape = 'f32[16,128]{1,0:T(8,128)}', space=vmem, size = 0x2000, scoped, tag = 'scratch operand']
  %s0 = inlined_call_operand.hbm [shape: f32[128,128], index: 0, kind: input, shape index: {}]
  %s1 = inlined_call_operand.hbm [shape: f32[2,8,128], index: 1, kind: output, shape index: {}]
  %s2 = sld [smem:[#allocation0]]
  $region49: #{tpu_custom_call.1} parent=0
    _
  %s4 = ssub.s32 1, %s2
  %s5 = scalar_select 0, %s4, %s2
  $region1: #{tpu_custom_call.1} parent=0
    #allocation4 [shape = 'u8[16384]{0}', space=vmem, size = 0x4000, scoped, tag = 'input window, operand 0']
    #allocation5 [shape = 's32[2]{0}', space=sflag, size = 0x8, scoped, tag = 'scoped memory for tpu_custom_call.1']
    #allocation6 [shape = 's32[2]{0}', space=sflag, size = 0x8, scoped, tag = 'scoped memory for tpu_custom_call.1']
    #allocation7 [shape = 'u8[8192]{0}', space=vmem, size = 0x2000, scoped, tag = 'output window, operand 0']
    %6 = vsyncpa [#allocation5], 0
    %s7 = scalar_lea.sflag [#allocation5], 1
    %8 = vsyncpa %s7, 0
    %9 = vsyncpa [#allocation6], 0
    %s10 = scalar_lea.sflag [#allocation6], 1
    %11 = vsyncpa %s10, 0
    loop: start=0, step=1, limit=10
    $region2: #{tpu_custom_call.1} parent=1 // loop_pre_header
      _
    $region3: #{tpu_custom_call.1} parent=1 // loop_header
      %s13 = sphi 0, %s17
      %p14 = scmp.ge.s32.totalorder %s13, 10
      %s20 = sphi 0, %s32
      %s21 = sphi 0, %s28
      %s22 = sphi 0, %s20
      %s23 = sphi 0, %s21
      %s24 = sphi 0, %s22
      %s25 = sphi 0, %s23
      %s39 = sphi 0, %s41
      %s42 = sphi 0, %s39
      %s43 = sphi 0, %s42
      %s59 = sphi 0, %s43
      %s65 = sphi 0, %s67
      %s68 = sphi 0, %s65
      %s69 = sphi 0, %s68
      %s85 = sphi 0, %s69
    $region4: #{tpu_custom_call.1} parent=1 // loop_header_branch
      %16 = sbr.rel (%p14) target = $region8
    $region5: #{tpu_custom_call.1} parent=1 // loop_body
      %s18 = ssub.s32 %s13, 1
      %s19 = ssub.s32 %s13, 2
      %s26 = sadd.s32 1, %s21
      %p27 = scmp.ge.s32.totalorder %s26, 4
      %s28 = scalar_select %p27, 0, %s26
      %s29 = sadd.s32 1, %s20
      %s30 = scalar_select %p27, %s29, %s20
      %p31 = scmp.ge.s32.totalorder %s30, 2
      %s32 = scalar_select %p31, 0, %s30
      %s33 = smul.u32 %s20, 4
      %s34 = sadd.s32 %s33, %s21
      %s35 = smul.u32 %s32, 4
      %s36 = sadd.s32 %s35, %s28
      %s37 = ssub.s32 %s34, %s36
      %p38 = scmp.eq.s32.totalorder %s37, 0
      %s40 = sadd.s32 %s39, 1
      %s41 = scalar_select %p38, %s39, %s40
      %p44 = pneg %p38
      %p45 = scmp.eq.s32.totalorder %s13, 7
      %p46 = por %p44, %p45
      %p47 = scmp.ne.s32.totalorder %s39, %s42
      %p48 = scmp.eq.s32.totalorder %s13, 0
      %p49 = por %p47, %p48
      %p50 = scmp.ne.s32.totalorder %s39, %s42
      %p51 = scmp.eq.s32.totalorder %s18, 7
      %p52 = por %p50, %p51
      %p53 = scmp.ne.s32.totalorder %s42, %s43
      %p54 = scmp.eq.s32.totalorder %s18, 0
      %p55 = por %p53, %p54
      %p56 = scmp.ne.s32.totalorder %s42, %s43
      %p57 = scmp.eq.s32.totalorder %s19, 7
      %p58 = por %p56, %p57
      %p60 = scmp.ne.s32.totalorder %s43, %s59
      %p61 = scmp.eq.s32.totalorder %s19, 0
      %p62 = por %p60, %p61
      %s63 = ssub.s32 %s20, %s32
      %p64 = scmp.eq.s32.totalorder %s63, 0
      %s66 = sadd.s32 %s65, 1
      %s67 = scalar_select %p64, %s65, %s66
      %p70 = pneg %p64
      %p71 = scmp.eq.s32.totalorder %s13, 7
      %p72 = por %p70, %p71
      %p73 = scmp.ne.s32.totalorder %s65, %s68
      %p74 = scmp.eq.s32.totalorder %s13, 0
      %p75 = por %p73, %p74
      %p76 = scmp.ne.s32.totalorder %s65, %s68
      %p77 = scmp.eq.s32.totalorder %s18, 7
      %p78 = por %p76, %p77
      %p79 = scmp.ne.s32.totalorder %s68, %s69
      %p80 = scmp.eq.s32.totalorder %s18, 0
      %p81 = por %p79, %p80
      %p82 = scmp.ne.s32.totalorder %s68, %s69
      %p83 = scmp.eq.s32.totalorder %s19, 7
      %p84 = por %p82, %p83
      %p86 = scmp.ne.s32.totalorder %s69, %s85
      %p87 = scmp.eq.s32.totalorder %s19, 0
      %p88 = por %p86, %p87
      %p89 = scmp.le.s32.totalorder 1, %s13
      %p90 = scmp.lt.s32.totalorder %s13, 9
      %p91 = pnand %p89, %p90
      %p92 = pneg %p91
      // Predicated region
      $region9: #{tpu_custom_call.1} parent=5 // pred_check
        _
      $region10: #{tpu_custom_call.1} parent=5 // pred_check_branch
        %94 = sbr.rel (%p91) target = $region12
      $region11: #{tpu_custom_call.1} parent=5 // pred_region
        %s95 = ssub.s32 %s13, 1
      $region12: #{tpu_custom_call.1} parent=5 // pred_fallthru
        _
      %p96 = scmp.lt.s32.totalorder %s13, 8
      // Predicated region
      $region13: #{tpu_custom_call.1} parent=5 // pred_check
        %p97 = pneg %p96
      $region14: #{tpu_custom_call.1} parent=5 // pred_check_branch
        %99 = sbr.rel (%p97) target = $region16
      $region15: #{tpu_custom_call.1} parent=5 // pred_region
        // Predicated region
        $region17: #{tpu_custom_call.1} parent=15 // pred_check
          %p100 = pneg %p49
        $region18: #{tpu_custom_call.1} parent=15 // pred_check_branch
          %102 = sbr.rel (%p100) target = $region20
        $region19: #{tpu_custom_call.1} parent=15 // pred_region
          %s103 = sand.u32 %s39, 1
          %s104 = scalar_lea.sflag [#allocation5], %s103
          %s105 = sand.u32 %s39, 1
          %s106 = smul.addr %s105, 16
          %s107 = scalar_lea.vmem [#allocation4], %s106
          %s108 = smul.u32 %s20, 4
          %s109 = sadd.s32 %s108, %s21
          %s110 = smul.u32 2, %s109
          %s112 = ssub.s32 256, 256
          %113 = vsyncadd %s104, %s112
          %s114 = smul.addr %s110, 128
          %s115 = scalar_lea.hbm %s0, %s114
          %s116 = sshll.u32 %s107, 4
          %s117 = int_to_ptr.vmem [resolvable:$true] %s116
          %122 = dma.hbm_to_vmem [thread:$0]  %s115, 256, %s117, %s104, 128, 128, 8
        $region20: #{tpu_custom_call.1} parent=15 // pred_fallthru
          _
      $region16: #{tpu_custom_call.1} parent=5 // pred_fallthru
        _
      %p123 = scmp.le.s32.totalorder 1, %s13
      %p124 = scmp.lt.s32.totalorder %s13, 9
      %p125 = pnand %p123, %p124
      %p126 = pneg %p125
      // Predicated region
      $region21: #{tpu_custom_call.1} parent=5 // pred_check
        _
      $region22: #{tpu_custom_call.1} parent=5 // pred_check_branch
        %128 = sbr.rel (%p125) target = $region24
      $region23: #{tpu_custom_call.1} parent=5 // pred_region
        %s129 = ssub.s32 %s13, 1
        %s130 = sand.u32 %s42, 1
        %s131 = scalar_lea.sflag [#allocation5], %s130
        %s132 = sand.u32 %s42, 1
        %s133 = smul.addr %s132, 16
        %s134 = scalar_lea.vmem [#allocation4], %s133
        // Predicated region
        $region25: #{tpu_custom_call.1} parent=23 // pred_check
          %p135 = pneg %p55
        $region26: #{tpu_custom_call.1} parent=23 // pred_check_branch
          %137 = sbr.rel (%p135) target = $region28
        $region27: #{tpu_custom_call.1} parent=23 // pred_region
          %138 = dma.done %s131, 256
        $region28: #{tpu_custom_call.1} parent=23 // pred_fallthru
          _
        %s139 = sand.u32 %s42, 1
        %s140 = scalar_lea.sflag [#allocation5], %s139
        %s141 = sand.u32 %s42, 1
        %s142 = smul.addr %s141, 16
        %s143 = scalar_lea.vmem [#allocation4], %s142
        %p144 = pneg %p55
        %p145 = pneg %p52
        %p146 = pneg %p81
        %p147 = pneg %p78
        %s148 = sand.u32 %s68, 1
        %s149 = scalar_lea.sflag [#allocation6], %s148
        %s150 = sand.u32 %s68, 1
        %s151 = smul.addr %s150, 8
        %s152 = scalar_lea.vmem [#allocation7], %s151
        %s153 = smul.u32 %s22, 4
        %s154 = sadd.s32 %s153, %s23
        %s155 = smul.u32 2, %s154
        %p156 = scmp.eq.s32.totalorder %s23, 0
        // Predicated region
        $region29: #{tpu_custom_call.1} parent=23 // pred_check
          %p157 = pneg %p156
        $region30: #{tpu_custom_call.1} parent=23 // pred_check_branch
          %159 = sbr.rel (%p157) target = $region32
        $region31: #{tpu_custom_call.1} parent=23 // pred_region
          %160 = vst [vmem:[#allocation2] sm:$0xff] -1e+30
          %161 = vst [vmem:[#allocation2 + $0x8] sm:$0xff] -1e+30
          %162 = vst [vmem:[#allocation3] sm:$0xff] 0.0
          %163 = vst [vmem:[#allocation3 + $0x8] sm:$0xff] 0.0
        $region32: #{tpu_custom_call.1} parent=23 // pred_fallthru
          _
        %v164 = vld [vmem:[%s134] sm:$0xff]
        %v165 = vld [vmem:[%s134 + $0x8] sm:$0xff]
        %v166 = vld [vmem:[#allocation2] sm:$0xff]
        %v167 = vld [vmem:[#allocation2 + $0x8] sm:$0xff]
        %v168 = vmax.f32 %v166, %v164
        %v169 = vmax.f32 %v167, %v165
        %v170 = vld [vmem:[#allocation3] sm:$0xff]
        %v171 = vld [vmem:[#allocation3 + $0x8] sm:$0xff]
        %v172 = vsub.f32 %v166, %v168
        %v173 = vsub.f32 %v167, %v169
        %v174 = vmul.f32 %v172, 1.442695
        %v175 = vpow.pop %v174
        %v176 = vmul.f32 %v173, 1.442695
        %v177 = vpow.pop %v176
        %v178 = vmul.f32 %v170, %v175
        %v179 = vmul.f32 %v171, %v177
        %v180 = vsub.f32 %v164, %v168
        %v181 = vsub.f32 %v165, %v169
        %v182 = vmul.f32 %v180, 1.442695
        %v183 = vpow.pop %v182
        %v184 = vmul.f32 %v181, 1.442695
        %v185 = vpow.pop %v184
        %v186 = vadd.f32 %v178, %v183
        %v187 = vadd.f32 %v179, %v185
        %188 = vst [vmem:[#allocation3] sm:$0xff] %v186
        %189 = vst [vmem:[#allocation3 + $0x8] sm:$0xff] %v187
        %190 = vst [vmem:[#allocation2] sm:$0xff] %v168
        %191 = vst [vmem:[#allocation2 + $0x8] sm:$0xff] %v169
        %p192 = scmp.eq.s32.totalorder %s23, 3
        // Predicated region
        $region33: #{tpu_custom_call.1} parent=23 // pred_check
          %p193 = pneg %p192
        $region34: #{tpu_custom_call.1} parent=23 // pred_check_branch
          %195 = sbr.rel (%p193) target = $region36
        $region35: #{tpu_custom_call.1} parent=23 // pred_region
          %v196 = vld [vmem:[#allocation2] sm:$0xff]
          %v197 = vld [vmem:[#allocation2 + $0x8] sm:$0xff]
          %v198 = vmax.f32 %v196, %v197
          %199 = vmax.xlane.f32.xlu0 %v198
          %v200 = vpop.xlane.xlu0 %199
          %v201 = vrot.slane %v200, 4
          %v202 = vmax.f32 %v200, %v201
          %v203 = vrot.slane %v202, 2
          %v204 = vmax.f32 %v202, %v203
          %v205 = vrot.slane %v204, 1
          %v206 = vmax.f32 %v204, %v205
          %s207 = vtos %v206
          %v208 = vstv %s207
          %v209 = vld [vmem:[#allocation3] sm:$0xff]
          %v210 = vld [vmem:[#allocation3 + $0x8] sm:$0xff]
          %v211 = vsub.f32 %v196, %v208
          %v212 = vsub.f32 %v197, %v208
          %v213 = vmul.f32 %v211, 1.442695
          %v214 = vpow.pop %v213
          %v215 = vmul.f32 %v212, 1.442695
          %v216 = vpow.pop %v215
          %v217 = vmul.f32 %v209, %v214
          %v218 = vmul.f32 %v210, %v216
          %v219 = vadd.f32 %v217, %v218
          %220 = vadd.xlane.f32.xlu0 %v219
          %v221 = vpop.xlane.xlu0 %220
          %v222 = vrot.slane %v221, 4
          %v223 = vadd.f32 %v221, %v222
          %v224 = vrot.slane %v223, 2
          %v225 = vadd.f32 %v223, %v224
          %v226 = vrot.slane %v225, 1
          %v227 = vadd.f32 %v225, %v226
          %s228 = vtos %v227
          %v229 = vstv %s228
          %v230 = vlog2.pop %v229
          %v231 = vmul.f32 %v230, 0.6931472
          %v232 = vadd.f32 %v208, %v231
          %233 = vst [vmem:[%s152] sm:$0xff] %v232
        $region36: #{tpu_custom_call.1} parent=23 // pred_fallthru
          _
        %s234 = sand.u32 %s68, 1
        %s235 = scalar_lea.sflag [#allocation6], %s234
        %s236 = sand.u32 %s68, 1
        %s237 = smul.addr %s236, 8
        %s238 = scalar_lea.vmem [#allocation7], %s237
        // Predicated region
        $region37: #{tpu_custom_call.1} parent=23 // pred_check
          %p239 = pneg %p78
        $region38: #{tpu_custom_call.1} parent=23 // pred_check_branch
          %241 = sbr.rel (%p239) target = $region40
        $region39: #{tpu_custom_call.1} parent=23 // pred_region
          %s243 = ssub.s32 128, 128
          %244 = vsyncadd %s235, %s243
          %s245 = smul.addr %s22, 128
          %s246 = scalar_lea.hbm %s1, %s245
          %s248 = sshll.u32 %s238, 4
          %s249 = int_to_ptr.vmem [resolvable:$true] %s248
          %251 = dma.vmem_to_hbm [thread:$0]  %s249, 128, %s246, %s235
        $region40: #{tpu_custom_call.1} parent=23 // pred_fallthru
          _
      $region24: #{tpu_custom_call.1} parent=5 // pred_fallthru
        _
      %p252 = scmp.le.s32.totalorder 2, %s13
      // Predicated region
      $region41: #{tpu_custom_call.1} parent=5 // pred_check
        %p253 = pneg %p252
      $region42: #{tpu_custom_call.1} parent=5 // pred_check_branch
        %255 = sbr.rel (%p253) target = $region44
      $region43: #{tpu_custom_call.1} parent=5 // pred_region
        %s256 = ssub.s32 %s13, 2
        // Predicated region
        $region45: #{tpu_custom_call.1} parent=43 // pred_check
          %p257 = pneg %p84
        $region46: #{tpu_custom_call.1} parent=43 // pred_check_branch
          %259 = sbr.rel (%p257) target = $region48
        $region47: #{tpu_custom_call.1} parent=43 // pred_region
          %s260 = sand.u32 %s69, 1
          %s261 = scalar_lea.sflag [#allocation6], %s260
          %s262 = sand.u32 %s69, 1
          %s263 = smul.addr %s262, 8
          %s264 = scalar_lea.vmem [#allocation7], %s263
          %265 = dma.done %s261, 128
        $region48: #{tpu_custom_call.1} parent=43 // pred_fallthru
          _
      $region44: #{tpu_custom_call.1} parent=5 // pred_fallthru
        _
    $region6: #{tpu_custom_call.1} parent=1 // loop_footer
      %s17 = sadd.s32 1, %s13
    $region7: #{tpu_custom_call.1} parent=1 // loop_footer_branch
      %12 = sbr.rel target = $region3
    $region8: #{tpu_custom_call.1} parent=1 // loop_exit
      _
    %266 = vsyncpa [#allocation5], 1
    %s267 = scalar_lea.sflag [#allocation5], 1
    %268 = vsyncpa %s267, 1
    %269 = vsyncpa [#allocation6], 1
    %s270 = scalar_lea.sflag [#allocation6], 1
    %271 = vsyncpa %s270, 1

</llo_original>
